<compile_context>
chip_gen: v5e
topology: v5e:2x2
jax: 0.10.0
libtpu: 0.0.40
codegen_flags: <defaults>
</compile_context>

<pallas_src>
import functools

import jax
import jax.numpy as jnp
from jax.experimental import pallas as pl
from jax.experimental.pallas import tpu as pltpu


def _layernorm_kernel(params_ref, x_ref, o_ref, *, eps, d_model):
    # params_ref: SMEM (2,) f32 -> [alpha, bias]
    # x_ref / o_ref: VMEM (tm, d_model)
    x = x_ref[...].astype(jnp.float32)

    inv_n = 1.0 / d_model
    # PyTorch x.std() default is the *unbiased* estimator (divide by N-1);
    # for d_model == 1 torch yields NaN, so propagate NaN the same way.
    inv_nm1 = (1.0 / (d_model - 1)) if d_model > 1 else float("nan")

    mean = jnp.sum(x, axis=-1, keepdims=True) * inv_n          # (tm, 1)
    centered = x - mean
    var = jnp.sum(centered * centered, axis=-1, keepdims=True) * inv_nm1
    std = jnp.sqrt(var)                                        # (tm, 1)

    alpha = params_ref[0]
    bias = params_ref[1]

    # Fold alpha into the per-row scale: the divide touches only (tm, 1)
    # elements; the full tile then needs just one multiply-add.
    scale = alpha / (std + eps)                                # eps on std (torch)
    o_ref[...] = (centered * scale + bias).astype(o_ref.dtype)


def _round_up(n, m):
    return pl.cdiv(n, m) * m


def layer_normalization(x, alpha, bias, *, eps=1e-6, tm=256):
    """x: (..., d_model); alpha, bias: scalar parameters (shape (1,) like the module)."""
    orig_shape = x.shape
    d = orig_shape[-1]
    M = 1
    for s in orig_shape[:-1]:
        M *= s
    x_flat = x.reshape(M, d)

    # Row tile: multiple of 8 (sublane); cap the f32-equivalent tile at ~4 MiB
    # so double-buffered in/out tiles + f32 temporaries fit the raised VMEM
    # budget on every chip generation.
    bytes_per_row_f32 = d * 4
    max_rows = max(8, ((4 * 1024 * 1024) // max(bytes_per_row_f32, 1)) // 8 * 8)
    tm_eff = int(min(tm, max_rows, _round_up(M, 8)))

    M_pad = int(_round_up(M, tm_eff))
    if M_pad != M:
        # Rows are independent; padded (zero) rows produce finite junk that is
        # sliced off below.
        x_flat = jnp.pad(x_flat, ((0, M_pad - M), (0, 0)))

    # Scalar params packed into SMEM (no per-tile VMEM traffic).
    params = jnp.concatenate(
        [jnp.reshape(alpha, (1,)), jnp.reshape(bias, (1,))]
    ).astype(jnp.float32)

    kernel = functools.partial(_layernorm_kernel, eps=float(eps), d_model=d)

    out_flat = pl.pallas_call(
        kernel,
        out_shape=jax.ShapeDtypeStruct((M_pad, d), x.dtype),
        grid_spec=pltpu.PrefetchScalarGridSpec(
            num_scalar_prefetch=0,
            grid=(M_pad // tm_eff,),
            in_specs=[
                pl.BlockSpec(memory_space=pltpu.MemorySpace.SMEM),   # [alpha, bias]
                pl.BlockSpec((tm_eff, d), lambda i: (i, 0)),          # x row tile
            ],
            out_specs=pl.BlockSpec((tm_eff, d), lambda i: (i, 0)),
        ),
        compiler_params=pltpu.CompilerParams(
            dimension_semantics=("parallel",),
            vmem_limit_bytes=48 * 1024 * 1024,
        ),
    )(params, x_flat)

    out = out_flat[:M] if M_pad != M else out_flat
    return out.reshape(orig_shape)


if __name__ == "__main__":
    # Small shapes consistent with the module: batch=2, seq=8, hidden=32
    batch, seq, d_model = 2, 8, 32
    eps = 1e-6

    key = jax.random.PRNGKey(0)
    kx, ka, kb = jax.random.split(key, 3)

    x = jax.random.normal(kx, (batch, seq, d_model), dtype=jnp.float32)
    # Module init is alpha=1, bias=0; perturb deterministically so both
    # parameters are actually exercised by the correctness check.
    alpha = jnp.ones((1,), jnp.float32) + 0.5 * jax.random.normal(ka, (1,), jnp.float32)
    bias = jnp.zeros((1,), jnp.float32) + 0.5 * jax.random.normal(kb, (1,), jnp.float32)

    out = layer_normalization(x, alpha, bias, eps=eps)
    out = jax.block_until_ready(out)

    # Reference in plain JAX (unbiased std, eps added to std — matches torch).
    mean = x.mean(axis=-1, keepdims=True)
    std = jnp.sqrt(jnp.var(x, axis=-1, keepdims=True, ddof=1))
    ref = alpha * (x - mean) / (std + eps) + bias

    assert out.shape == (batch, seq, d_model)
    assert jnp.allclose(out, ref, atol=1e-5, rtol=1e-5), "mismatch vs reference"

    print("KERNEL_OK")
</pallas_src>

<mosaic_0001>
module attributes {stable_mosaic.version = 11 : i64} {
  func.func @_layernorm_kernel(%arg0: i32, %arg1: memref<2xf32, #tpu.memory_space<smem>>, %arg2: memref<16x32xf32, #tpu.memory_space<vmem>>, %arg3: memref<16x32xf32, #tpu.memory_space<vmem>>) attributes {dimension_semantics = [#tpu.dimension_semantics<parallel>], iteration_bounds = array<i64: 1>, scalar_prefetch = 0 : i64, scratch_operands = 0 : i64, tpu.core_type = #tpu.core_type<tc>, window_params = [{transform_indices = @transform_0, window_bounds = array<i64: 2>}, {transform_indices = @transform_1, window_bounds = array<i64: 16, 32>}, {transform_indices = @transform_2, window_bounds = array<i64: 16, 32>}]} {
    %c0 = arith.constant 0 : index
    %c0_0 = arith.constant 0 : index
    %0 = vector.load %arg2[%c0, %c0_0] : memref<16x32xf32, #tpu.memory_space<vmem>>, vector<16x32xf32>
    %cst = arith.constant dense<0.000000e+00> : vector<16xf32>
    %1 = vector.multi_reduction <add>, %0, %cst [1] : vector<16x32xf32> to vector<16xf32>
    %2 = vector.shape_cast %1 : vector<16xf32> to vector<16x1xf32>
    %cst_1 = arith.constant 3.125000e-02 : f32
    %3 = vector.broadcast %cst_1 : f32 to vector<16x1xf32>
    %4 = arith.mulf %2, %3 : vector<16x1xf32>
    %5 = vector.broadcast %4 : vector<16x1xf32> to vector<16x32xf32>
    %6 = arith.subf %0, %5 : vector<16x32xf32>
    %7 = arith.mulf %6, %6 : vector<16x32xf32>
    %cst_2 = arith.constant dense<0.000000e+00> : vector<16xf32>
    %8 = vector.multi_reduction <add>, %7, %cst_2 [1] : vector<16x32xf32> to vector<16xf32>
    %9 = vector.shape_cast %8 : vector<16xf32> to vector<16x1xf32>
    %cst_3 = arith.constant 0.0322580636 : f32
    %10 = vector.broadcast %cst_3 : f32 to vector<16x1xf32>
    %11 = arith.mulf %9, %10 : vector<16x1xf32>
    %12 = math.sqrt %11 : vector<16x1xf32>
    %c0_4 = arith.constant 0 : index
    %13 = memref.load %arg1[%c0_4] : memref<2xf32, #tpu.memory_space<smem>>
    %c1 = arith.constant 1 : index
    %14 = memref.load %arg1[%c1] : memref<2xf32, #tpu.memory_space<smem>>
    %cst_5 = arith.constant 9.99999997E-7 : f32
    %15 = vector.broadcast %cst_5 : f32 to vector<16x1xf32>
    %16 = arith.addf %12, %15 : vector<16x1xf32>
    %17 = vector.broadcast %13 : f32 to vector<16x1xf32>
    %18 = arith.divf %17, %16 : vector<16x1xf32>
    %19 = vector.broadcast %18 : vector<16x1xf32> to vector<16x32xf32>
    %20 = arith.mulf %6, %19 : vector<16x32xf32>
    %21 = vector.broadcast %14 : f32 to vector<16x32xf32>
    %22 = arith.addf %20, %21 : vector<16x32xf32>
    %c0_6 = arith.constant 0 : index
    %c0_7 = arith.constant 0 : index
    %23 = vector.load %arg3[%c0_6, %c0_7] : memref<16x32xf32, #tpu.memory_space<vmem>>, vector<16x32xf32>
    tpu.vector_store %arg3[%c0_6, %c0_7], %22 {strides = array<i32>} : memref<16x32xf32, #tpu.memory_space<vmem>>, vector<16x32xf32>,
    return
  }
  func.func @transform_0(%arg0: i32) -> i32 {
    %c0_i32 = arith.constant 0 : i32
    %c0_i32_0 = arith.constant 0 : i32
    return %c0_i32 : i32
  }
  func.func @transform_1(%arg0: i32) -> (i32, i32) {
    %c0_i32 = arith.constant 0 : i32
    %c0_i32_0 = arith.constant 0 : i32
    return %arg0, %c0_i32 : i32, i32
  }
  func.func @transform_2(%arg0: i32) -> (i32, i32) {
    %c0_i32 = arith.constant 0 : i32
    %c0_i32_0 = arith.constant 0 : i32
    return %arg0, %c0_i32 : i32, i32
  }
}

</mosaic_0001>

<llo_original>
// kernel: tpu_custom_call.1
$region0: #{tpu_custom_call.1}
  #allocation0 [shape = 'u32[]', space=smem, size = 0x4, offset = 0x4, fixed_abs, tag = 'smem constant byte address 0x4 - core index']
  #allocation1 [shape = 'u32[72,128]{1,0:T(1,128)}', space=vmem, size = 0x9000, scoped, tag = 'internal scratch']
  %s0 = inlined_call_operand.hbm [shape: f32[2], index: 0, kind: input, shape index: {}]
  %s1 = inlined_call_operand.hbm [shape: f32[16,32], index: 1, kind: input, shape index: {}]
  %s2 = inlined_call_operand.hbm [shape: f32[16,32], index: 2, kind: output, shape index: {}]
  %s3 = sld [smem:[#allocation0]]
  $region26: #{tpu_custom_call.1} parent=0
    _
  %s5 = ssub.s32 1, %s3
  %s6 = scalar_select 0, %s5, %s3
  $region1: #{tpu_custom_call.1} parent=0
    #allocation2 [shape = 'u8[512]{0}', space=smem, size = 0x200, scoped, tag = 'input window, operand 0, single buffered']
    #allocation3 [shape = 's32[1]{0}', space=sflag, size = 0x4, scoped, tag = 'scoped memory for tpu_custom_call.1']
    #allocation4 [shape = 's32[1]{0}', space=sflag, size = 0x4, scoped, tag = 'scoped memory for tpu_custom_call.1']
    #allocation5 [shape = 's32[1]{0}', space=sflag, size = 0x4, scoped, tag = 'scoped memory for tpu_custom_call.1']
    #allocation6 [shape = 'u8[8192]{0}', space=vmem, size = 0x2000, scoped, tag = 'input window, operand 1, single buffered']
    #allocation7 [shape = 'u8[8192]{0}', space=vmem, size = 0x2000, scoped, tag = 'output window, operand 0, single buffered']
    %7 = vsyncpa [#allocation5], 0
    %8 = vsyncpa [#allocation3], 0
    %9 = vsyncpa [#allocation4], 0
    // Predicated region
    $region2: #{tpu_custom_call.1} parent=1 // pred_check
      _
    $region3: #{tpu_custom_call.1} parent=1 // pred_check_branch
      %11 = sbr.rel (0) target = $region5
    $region4: #{tpu_custom_call.1} parent=1 // pred_region
      %13 = vsyncadd [#allocation5], 0
      %s15 = sshll.u32 %s0, 4
      %s16 = int_to_ptr.hbm [resolvable:$true] %s15
      %18 = dma.hbm_to_smem %s16, 16, [#allocation2], [#allocation5]
    $region5: #{tpu_custom_call.1} parent=1 // pred_fallthru
      _
    // Predicated region
    $region6: #{tpu_custom_call.1} parent=1 // pred_check
      _
    $region7: #{tpu_custom_call.1} parent=1 // pred_check_branch
      %20 = sbr.rel (0) target = $region9
    $region8: #{tpu_custom_call.1} parent=1 // pred_region
      %22 = vsyncadd [#allocation3], 0
      %s23 = sshll.u32 %s1, 4
      %s24 = int_to_ptr.hbm [resolvable:$true] %s23
      %s25 = sshll.u32 [#allocation6], 4
      %s26 = int_to_ptr.vmem [resolvable:$true] %s25
      %31 = dma.hbm_to_vmem [thread:$0]  %s24, 256, %s26, [#allocation3], 128, 128, 8
    $region9: #{tpu_custom_call.1} parent=1 // pred_fallthru
      _
    // Predicated region
    $region10: #{tpu_custom_call.1} parent=1 // pred_check
      _
    $region11: #{tpu_custom_call.1} parent=1 // pred_check_branch
      %33 = sbr.rel (0) target = $region13
    $region12: #{tpu_custom_call.1} parent=1 // pred_region
      %35 = dma.done [#allocation5], 16
    $region13: #{tpu_custom_call.1} parent=1 // pred_fallthru
      _
    // Predicated region
    $region14: #{tpu_custom_call.1} parent=1 // pred_check
      _
    $region15: #{tpu_custom_call.1} parent=1 // pred_check_branch
      %37 = sbr.rel (0) target = $region17
    $region16: #{tpu_custom_call.1} parent=1 // pred_region
      %39 = dma.done [#allocation3], 256
    $region17: #{tpu_custom_call.1} parent=1 // pred_fallthru
      _
    %40 = sfence
    %v41 = vld [vmem:[#allocation6] sm:$0xff]
    %v42 = vld [vmem:[#allocation6 + $0x8] sm:$0xff]
    %vm43 = vcmask 261120
    %v44 = vsel %vm43, %v41, 0.0
    %45 = vadd.xlane.f32.xlu0 %v44
    %v46 = vpop.xlane.xlu0 %45
    %v47 = vsel %vm43, %v42, 0.0
    %48 = vadd.xlane.f32.xlu0 %v47
    %v49 = vpop.xlane.xlu0 %48
    %v50 = vmul.f32 %v46, 0.03125
    %v51 = vmul.f32 %v49, 0.03125
    %v52 = vsub.f32 %v41, %v50
    %v53 = vsub.f32 %v42, %v51
    %v54 = vmul.f32 %v52, %v52
    %v55 = vmul.f32 %v53, %v53
    %v56 = vsel %vm43, %v54, 0.0
    %57 = vadd.xlane.f32.xlu0 %v56
    %v58 = vpop.xlane.xlu0 %57
    %v59 = vsel %vm43, %v55, 0.0
    %60 = vadd.xlane.f32.xlu0 %v59
    %v61 = vpop.xlane.xlu0 %60
    %v62 = vmul.f32 %v58, 0.032258064
    %v63 = vmul.f32 %v61, 0.032258064
    %v64 = vrsqrt.pop %v62
    %v65 = vmul.f32 %v64, %v62
    %v66 = vmul.f32 %v65, %v64
    %v67 = vmul.f32 0.5, %v66
    %v68 = vsub.f32 1.5, %v67
    %v69 = vmul.f32 %v64, %v68
    %v70 = vmul.f32 %v62, %v69
    %vm71 = vcmp.eq.f32.partialorder %v62, inf
    %v72 = vsel %vm71, %v62, %v70
    %vm73 = vcmp.eq.f32.partialorder %v62, 0.0
    %v74 = vand.u32 %v62, 2147483648
    %v75 = vsel %vm73, %v74, %v72
    %v76 = vrsqrt.pop %v63
    %v77 = vmul.f32 %v76, %v63
    %v78 = vmul.f32 %v77, %v76
    %v79 = vmul.f32 0.5, %v78
    %v80 = vsub.f32 1.5, %v79
    %v81 = vmul.f32 %v76, %v80
    %v82 = vmul.f32 %v63, %v81
    %vm83 = vcmp.eq.f32.partialorder %v63, inf
    %v84 = vsel %vm83, %v63, %v82
    %vm85 = vcmp.eq.f32.partialorder %v63, 0.0
    %v86 = vand.u32 %v63, 2147483648
    %v87 = vsel %vm85, %v86, %v84
    %s88 = sld [smem:[#allocation2]]
    %s89 = sld [smem:[#allocation2 + $0x1]]
    %v90 = vadd.f32 %v75, 1e-06
    %v91 = vadd.f32 %v87, 1e-06
    %v92 = vstv %s88
    %v93 = vrcp.pop %v90
    %v94 = vmul.f32 %v90, %v93
    %v95 = vsub.f32 1.0, %v94
    %v96 = vmul.f32 %v93, %v95
    %v97 = vadd.f32 %v93, %v96
    %vm98 = vweird.f32 %v90
    %vm99 = vweird.f32 %v93
    %vm100 = vmor %vm98, %vm99
    %v101 = vsel %vm100, %v93, %v97
    %v102 = vand.u32 2147483647, %v90
    %vm103 = vcmp.eq.f32.partialorder %v102, 8.507059e+37
    %v104 = vand.u32 %v90, 2147483648
    %v105 = vor.u32 1.1754944e-38, %v104
    %v106 = vsel %vm103, %v105, %v101
    %v107 = vmul.f32 %v92, %v106
    %v108 = vrcp.pop %v91
    %v109 = vmul.f32 %v91, %v108
    %v110 = vsub.f32 1.0, %v109
    %v111 = vmul.f32 %v108, %v110
    %v112 = vadd.f32 %v108, %v111
    %vm113 = vweird.f32 %v91
    %vm114 = vweird.f32 %v108
    %vm115 = vmor %vm113, %vm114
    %v116 = vsel %vm115, %v108, %v112
    %v117 = vand.u32 2147483647, %v91
    %vm118 = vcmp.eq.f32.partialorder %v117, 8.507059e+37
    %v119 = vand.u32 %v91, 2147483648
    %v120 = vor.u32 1.1754944e-38, %v119
    %v121 = vsel %vm118, %v120, %v116
    %v122 = vmul.f32 %v92, %v121
    %v123 = vmul.f32 %v52, %v107
    %v124 = vmul.f32 %v53, %v122
    %v125 = vstv %s89
    %v126 = vadd.f32 %v123, %v125
    %v127 = vadd.f32 %v124, %v125
    %128 = vst.msk [vmem:[#allocation7] sm:$0xff] %vm43, %v126
    %129 = vst.msk [vmem:[#allocation7 + $0x8] sm:$0xff] %vm43, %v127
    // Predicated region
    $region18: #{tpu_custom_call.1} parent=1 // pred_check
      _
    $region19: #{tpu_custom_call.1} parent=1 // pred_check_branch
      %131 = sbr.rel (0) target = $region21
    $region20: #{tpu_custom_call.1} parent=1 // pred_region
      %133 = vsyncadd [#allocation4], 0
      %s134 = sshll.u32 [#allocation7], 4
      %s135 = int_to_ptr.vmem [resolvable:$true] %s134
      %s136 = sshll.u32 %s2, 4
      %s137 = int_to_ptr.hbm [resolvable:$true] %s136
      %142 = dma.vmem_to_hbm [thread:$0]  %s135, 256, %s137, [#allocation4], 128, 128, 8
    $region21: #{tpu_custom_call.1} parent=1 // pred_fallthru
      _
    // Predicated region
    $region22: #{tpu_custom_call.1} parent=1 // pred_check
      _
    $region23: #{tpu_custom_call.1} parent=1 // pred_check_branch
      %144 = sbr.rel (0) target = $region25
    $region24: #{tpu_custom_call.1} parent=1 // pred_region
      %146 = dma.done [#allocation4], 256
    $region25: #{tpu_custom_call.1} parent=1 // pred_fallthru
      _
    %147 = vsyncpa [#allocation3], 1
    %148 = vsyncpa [#allocation4], 1
    %149 = vsyncpa [#allocation5], 1

</llo_original>
